<compile_context>
chip_gen: v6e
topology: v6e:2x2x1
jax: 0.10.0
libtpu: 0.0.40
codegen_flags: <defaults>
</compile_context>

<pallas_src>
import functools

import jax
import jax.numpy as jnp
from jax.experimental import pallas as pl
from jax.experimental.pallas import tpu as pltpu

EPS = 1e-4
NEG_SLOPE = 0.01


def _round_up(x, m):
    return ((x + m - 1) // m) * m


def _vmem_capacity_bytes():
    """Physical VMEM per core; conservative default if the query fails."""
    try:
        return int(pltpu.get_tpu_info().vmem_capacity_bytes)
    except Exception:
        return 64 * 1024 * 1024  # v7x has the smallest physical VMEM (64 MiB)


def _pick_tiles(n_pad, f_in_pad, f_out_pad, budget_bytes, in_itemsize):
    """Choose (tn, tk) — lane-dense, VMEM-budget-aware, v7x-occupancy-aware."""

    def cands(total):
        c = [t for t in (512, 256, 128) if total % t == 0]
        return c if c else [total]

    tn_cands = cands(f_out_pad)
    # v7x shards "parallel" grid axes over its 2 TensorCores: prefer tile
    # widths that give >= 2 grid steps along the output-feature axis.
    occ = [t for t in tn_cands if f_out_pad // t >= 2]
    if occ:
        tn_cands = occ
    tk_cands = cands(f_in_pad)

    def footprint(tn, tk):
        # 2 x buffers + 3 weight buffers (Buffered(3)) in the operand dtype,
        # plus 2 output buffers and 1 f32 accumulator scratch.
        return (in_itemsize * (2 * n_pad * tk + 3 * tk * tn)
                + 4 * (2 * n_pad * tn + n_pad * tn))

    for tn in tn_cands:          # widest (lane-dense) output tile first
        for tk in tk_cands:      # then widest K tile
            if footprint(tn, tk) <= budget_bytes:
                return tn, tk
    # Nothing fits the soft budget: fall back to the smallest footprint and
    # rely on vmem_limit_bytes being raised to the physical capacity.
    return tn_cands[-1], tk_cands[-1]


def _linear_bn_lrelu_kernel(x_ref, wt_ref, o_ref, acc_ref, *, true_n, n_pad):
    # x_ref  : (n_pad, tk)   operand dtype, zero-padded batch rows / K cols
    # wt_ref : (tk, tn)      operand dtype, pre-transposed weight tile
    # o_ref  : (n_pad, tn)   f32
    # acc_ref: (n_pad, tn)   f32 accumulator, resident across the K grid axis
    k = pl.program_id(1)

    @pl.when(k == 0)
    def _():
        acc_ref[...] = jnp.zeros_like(acc_ref)

    # Linear (no bias): plain (M,K)@(K,N) MXU feed, f32 accumulation.
    acc_ref[...] += jnp.dot(x_ref[...], wt_ref[...],
                            preferred_element_type=jnp.float32)

    @pl.when(k == pl.num_programs(1) - 1)
    def _():
        y = acc_ref[...]                                    # (n_pad, tn) f32
        inv_n = jnp.float32(1.0 / true_n)

        # BatchNorm1d, training-mode batch stats, biased variance, affine=False.
        # Padded batch rows of y are exactly zero (x rows zero-padded), so the
        # plain column sum already gives the true-batch mean.
        mean = jnp.sum(y, axis=0, keepdims=True) * inv_n    # (1, tn)

        # Two-pass variance about the mean (no E[y^2]-mean^2 cancellation).
        d = y - mean
        if n_pad != true_n:
            # Mask padded rows out of the centered sum of squares.
            row = jax.lax.broadcasted_iota(jnp.int32, y.shape, 0)
            d = jnp.where(row < true_n, d, 0.0)
        var = jnp.sum(d * d, axis=0, keepdims=True) * inv_n

        y_hat = (y - mean) * jax.lax.rsqrt(var + EPS)       # rsqrt -> EUP slot

        # Leaky ReLU (slope 0.01): one VPU max instead of cmp + select.
        o_ref[...] = jnp.maximum(y_hat, NEG_SLOPE * y_hat).astype(o_ref.dtype)


def linear_bn_leaky_relu(x, weight, *, use_bf16=False):
    """x: (N, in_features); weight: (out_features, in_features) (PyTorch layout).

    use_bf16=True casts the matmul operands to bf16 (f32 accumulation kept) to
    halve operand HBM traffic on v6e/v7x; off by default to keep f32 numerics.
    """
    n, f_in = x.shape
    f_out, f_in_w = weight.shape
    assert f_in == f_in_w
    assert n >= 2, "BatchNorm1d training-mode statistics need batch size >= 2"

    in_dtype = jnp.bfloat16 if use_bf16 else jnp.float32
    itemsize = jnp.dtype(in_dtype).itemsize
    sublane = 16 if use_bf16 else 8

    n_pad = _round_up(n, sublane)
    f_in_pad = _round_up(f_in, 128)
    f_out_pad = _round_up(f_out, 128)

    # Layout plumbing on the XLA side; pads are skipped when already aligned.
    # (When the weight is static across calls, hoist this transpose/pad to
    # init time — it is pure data movement.)
    x_p = x.astype(in_dtype)
    if (n_pad, f_in_pad) != (n, f_in):
        x_p = jnp.pad(x_p, ((0, n_pad - n), (0, f_in_pad - f_in)))
    wt_p = weight.astype(in_dtype).T
    if (f_in_pad, f_out_pad) != (f_in, f_out):
        wt_p = jnp.pad(wt_p, ((0, f_in_pad - f_in), (0, f_out_pad - f_out)))

    # Per-generation VMEM budget and tile sizes.
    cap = _vmem_capacity_bytes()
    vmem_limit = int(cap * 0.9)
    tn, tk = _pick_tiles(n_pad, f_in_pad, f_out_pad, int(cap * 0.8), itemsize)

    # Output-feature tiles ("parallel", megacore-shardable) x K tiles
    # (reduction, innermost, "arbitrary").
    grid = (f_out_pad // tn, f_in_pad // tk)

    kernel = functools.partial(_linear_bn_lrelu_kernel, true_n=n, n_pad=n_pad)

    def _run(weight_pipeline_mode):
        if weight_pipeline_mode is None:
            w_spec = pl.BlockSpec((tk, tn), lambda j, k: (k, j))
        else:
            w_spec = pl.BlockSpec((tk, tn), lambda j, k: (k, j),
                                  pipeline_mode=weight_pipeline_mode)
        return pl.pallas_call(
            kernel,
            out_shape=jax.ShapeDtypeStruct((n_pad, f_out_pad), jnp.float32),
            grid_spec=pltpu.PrefetchScalarGridSpec(
                num_scalar_prefetch=0,
                grid=grid,
                in_specs=[
                    pl.BlockSpec((n_pad, tk), lambda j, k: (0, k)),   # x tile
                    w_spec,                                           # weight tile
                ],
                out_specs=pl.BlockSpec((n_pad, tn), lambda j, k: (0, j)),
                scratch_shapes=[pltpu.VMEM((n_pad, tn), jnp.float32)],
            ),
            compiler_params=pltpu.CompilerParams(
                dimension_semantics=("parallel", "arbitrary"),
                vmem_limit_bytes=vmem_limit,
            ),
            cost_estimate=pl.CostEstimate(
                flops=2 * n_pad * f_in_pad * f_out_pad,
                transcendentals=f_out_pad,
                bytes_accessed=(itemsize * ((f_out_pad // tn) * n_pad * f_in_pad
                                            + f_in_pad * f_out_pad)
                                + 4 * n_pad * f_out_pad),
            ),
        )(x_p, wt_p)

    try:
        # Deeper weight pipelining: third buffer hides DMA issue latency when
        # the per-step MXU+epilogue work is short (small batch).
        out_pad = _run(pl.Buffered(3))
    except Exception:
        # Conservative fallback for environments without pipeline_mode support.
        out_pad = _run(None)

    if (n_pad, f_out_pad) != (n, f_out):
        return out_pad[:n, :f_out]
    return out_pad


def _reference(x, weight):
    y = x @ weight.T
    mean = jnp.mean(y, axis=0, keepdims=True)
    var = jnp.mean((y - mean) ** 2, axis=0, keepdims=True)
    y_hat = (y - mean) / jnp.sqrt(var + EPS)
    return jnp.where(y_hat >= 0.0, y_hat, NEG_SLOPE * y_hat)


if __name__ == "__main__":
    key = jax.random.PRNGKey(0)
    k_x, k_w = jax.random.split(key)

    batch = 8
    in_features = 32
    out_features = 16

    x = jax.random.normal(k_x, (batch, in_features), dtype=jnp.float32)
    # Deterministic "kaiming-uniform-like" init for the Linear weight.
    bound = 1.0 / (in_features ** 0.5)
    weight = jax.random.uniform(
        k_w, (out_features, in_features), dtype=jnp.float32,
        minval=-bound, maxval=bound)

    out = jax.block_until_ready(linear_bn_leaky_relu(x, weight))

    ref = _reference(x, weight)
    assert out.shape == (batch, out_features)
    assert jnp.allclose(out, ref, atol=1e-4, rtol=1e-4), "mismatch vs reference"

    print("KERNEL_OK")
</pallas_src>

<mosaic_0001>
module attributes {stable_mosaic.version = 11 : i64} {
  func.func @_linear_bn_lrelu_kernel(%arg0: i32, %arg1: i32, %arg2: memref<8x128xf32, #tpu.memory_space<vmem>>, %arg3: memref<128x128xf32, #tpu.memory_space<vmem>>, %arg4: memref<8x128xf32, #tpu.memory_space<vmem>>, %arg5: memref<8x128xf32, #tpu.memory_space<vmem>>) attributes {dimension_semantics = [#tpu.dimension_semantics<parallel>, #tpu.dimension_semantics<arbitrary>], iteration_bounds = array<i64: 1, 1>, scalar_prefetch = 0 : i64, scratch_operands = 1 : i64, tpu.core_type = #tpu.core_type<tc>, window_params = [{transform_indices = @transform_0, window_bounds = array<i64: 8, 128>}, {transform_indices = @transform_1, window_bounds = array<i64: 128, 128>}, {transform_indices = @transform_2, window_bounds = array<i64: 8, 128>}]} {
    %c0_i32 = arith.constant 0 : i32
    %0 = arith.cmpi eq, %arg1, %c0_i32 : i32
    %1 = arith.extui %0 : i1 to i32
    %c0_i32_0 = arith.constant 0 : i32
    %2 = arith.cmpi ne, %1, %c0_i32_0 : i32
    scf.if %2 {
      %cst_10 = arith.constant 0.000000e+00 : f32
      %12 = vector.broadcast %cst_10 : f32 to vector<8x128xf32>
      %c0_11 = arith.constant 0 : index
      %c0_12 = arith.constant 0 : index
      %13 = vector.load %arg5[%c0_11, %c0_12] : memref<8x128xf32, #tpu.memory_space<vmem>>, vector<8x128xf32>
      tpu.vector_store %arg5[%c0_11, %c0_12], %12 {strides = array<i32>} : memref<8x128xf32, #tpu.memory_space<vmem>>, vector<8x128xf32>,
    } else {
    }
    %c0 = arith.constant 0 : index
    %c0_1 = arith.constant 0 : index
    %3 = vector.load %arg5[%c0, %c0_1] : memref<8x128xf32, #tpu.memory_space<vmem>>, vector<8x128xf32>
    %c0_2 = arith.constant 0 : index
    %c0_3 = arith.constant 0 : index
    %4 = vector.load %arg2[%c0_2, %c0_3] : memref<8x128xf32, #tpu.memory_space<vmem>>, vector<8x128xf32>
    %c0_4 = arith.constant 0 : index
    %c0_5 = arith.constant 0 : index
    %5 = vector.load %arg3[%c0_4, %c0_5] : memref<128x128xf32, #tpu.memory_space<vmem>>, vector<128x128xf32>
    %cst = arith.constant dense<0.000000e+00> : vector<8x128xf32>
    %6 = tpu.matmul %4, %5, %cst {dimension_numbers = #tpu.dot_dimension_numbers<[1], [0], [0], [1], [0, 0, 1, 1], [], []>} : vector<8x128xf32>, vector<128x128xf32>, vector<8x128xf32> -> vector<8x128xf32>
    %7 = arith.addf %3, %6 : vector<8x128xf32>
    %c0_6 = arith.constant 0 : index
    %c0_7 = arith.constant 0 : index
    %8 = vector.load %arg5[%c0_6, %c0_7] : memref<8x128xf32, #tpu.memory_space<vmem>>, vector<8x128xf32>
    tpu.vector_store %arg5[%c0_6, %c0_7], %7 {strides = array<i32>} : memref<8x128xf32, #tpu.memory_space<vmem>>, vector<8x128xf32>,
    %c0_i32_8 = arith.constant 0 : i32
    %9 = arith.cmpi eq, %arg1, %c0_i32_8 : i32
    %10 = arith.extui %9 : i1 to i32
    %c0_i32_9 = arith.constant 0 : i32
    %11 = arith.cmpi ne, %10, %c0_i32_9 : i32
    scf.if %11 {
      %c0_10 = arith.constant 0 : index
      %c0_11 = arith.constant 0 : index
      %12 = vector.load %arg5[%c0_10, %c0_11] : memref<8x128xf32, #tpu.memory_space<vmem>>, vector<8x128xf32>
      %cst_12 = arith.constant dense<0.000000e+00> : vector<128xf32>
      %13 = vector.multi_reduction <add>, %12, %cst_12 [0] : vector<8x128xf32> to vector<128xf32>
      %14 = vector.shape_cast %13 : vector<128xf32> to vector<1x128xf32>
      %cst_13 = arith.constant 1.250000e-01 : f32
      %15 = vector.broadcast %cst_13 : f32 to vector<1x128xf32>
      %16 = arith.mulf %14, %15 : vector<1x128xf32>
      %17 = vector.broadcast %16 : vector<1x128xf32> to vector<8x128xf32>
      %18 = arith.subf %12, %17 : vector<8x128xf32>
      %19 = arith.mulf %18, %18 : vector<8x128xf32>
      %cst_14 = arith.constant dense<0.000000e+00> : vector<128xf32>
      %20 = vector.multi_reduction <add>, %19, %cst_14 [0] : vector<8x128xf32> to vector<128xf32>
      %21 = vector.shape_cast %20 : vector<128xf32> to vector<1x128xf32>
      %cst_15 = arith.constant 1.250000e-01 : f32
      %22 = vector.broadcast %cst_15 : f32 to vector<1x128xf32>
      %23 = arith.mulf %21, %22 : vector<1x128xf32>
      %24 = vector.broadcast %16 : vector<1x128xf32> to vector<8x128xf32>
      %25 = arith.subf %12, %24 : vector<8x128xf32>
      %cst_16 = arith.constant 9.99999974E-5 : f32
      %26 = vector.broadcast %cst_16 : f32 to vector<1x128xf32>
      %27 = arith.addf %23, %26 : vector<1x128xf32>
      %28 = math.rsqrt %27 : vector<1x128xf32>
      %29 = vector.broadcast %28 : vector<1x128xf32> to vector<8x128xf32>
      %30 = arith.mulf %25, %29 : vector<8x128xf32>
      %cst_17 = arith.constant 0.00999999977 : f32
      %31 = vector.broadcast %cst_17 : f32 to vector<8x128xf32>
      %32 = arith.mulf %31, %30 : vector<8x128xf32>
      %33 = arith.maximumf %30, %32 : vector<8x128xf32>
      %c0_18 = arith.constant 0 : index
      %c0_19 = arith.constant 0 : index
      %34 = vector.load %arg4[%c0_18, %c0_19] : memref<8x128xf32, #tpu.memory_space<vmem>>, vector<8x128xf32>
      tpu.vector_store %arg4[%c0_18, %c0_19], %33 {strides = array<i32>} : memref<8x128xf32, #tpu.memory_space<vmem>>, vector<8x128xf32>,
    } else {
    }
    return
  }
  func.func @transform_0(%arg0: i32, %arg1: i32) -> (i32, i32) {
    %c0_i32 = arith.constant 0 : i32
    %c0_i32_0 = arith.constant 0 : i32
    return %c0_i32, %arg1 : i32, i32
  }
  func.func @transform_1(%arg0: i32, %arg1: i32) -> (i32, i32) {
    %c0_i32 = arith.constant 0 : i32
    return %arg1, %arg0 : i32, i32
  }
  func.func @transform_2(%arg0: i32, %arg1: i32) -> (i32, i32) {
    %c0_i32 = arith.constant 0 : i32
    %c0_i32_0 = arith.constant 0 : i32
    return %c0_i32, %arg0 : i32, i32
  }
}

</mosaic_0001>

<llo_original>
// kernel: tpu_custom_call.1
$region0: #{tpu_custom_call.1}
  #allocation0 [shape = 'u32[]', space=smem, size = 0x4, offset = 0x4, fixed_abs, tag = 'smem constant byte address 0x4 - core index']
  #allocation1 [shape = 'u32[144,128]{1,0:T(1,128)}', space=vmem, size = 0x12000, scoped, tag = 'internal scratch']
  #allocation2 [shape = 'f32[8,128]{1,0:T(8,128)}', space=vmem, size = 0x1000, scoped, tag = 'scratch operand']
  %s0 = inlined_call_operand.hbm [shape: f32[8,128], index: 0, kind: input, shape index: {}]
  %s1 = inlined_call_operand.hbm [shape: f32[128,128], index: 1, kind: input, shape index: {}]
  %s2 = inlined_call_operand.hbm [shape: f32[8,128], index: 2, kind: output, shape index: {}]
  %s3 = sld [smem:[#allocation0]]
  $region34: #{tpu_custom_call.1} parent=0
    _
  %s5 = ssub.s32 1, %s3
  %s6 = scalar_select 0, %s5, %s3
  $region1: #{tpu_custom_call.1} parent=0
    #allocation3 [shape = 'u8[4096]{0}', space=vmem, size = 0x1000, scoped, tag = 'input window, operand 0, single buffered']
    #allocation4 [shape = 's32[1]{0}', space=sflag, size = 0x4, scoped, tag = 'scoped memory for tpu_custom_call.1']
    #allocation5 [shape = 's32[1]{0}', space=sflag, size = 0x4, scoped, tag = 'scoped memory for tpu_custom_call.1']
    #allocation6 [shape = 'u8[65536]{0}', space=vmem, size = 0x10000, scoped, tag = 'input window, operand 1, single buffered']
    #allocation7 [shape = 's32[1]{0}', space=sflag, size = 0x4, scoped, tag = 'scoped memory for tpu_custom_call.1']
    #allocation8 [shape = 'u8[4096]{0}', space=vmem, size = 0x1000, scoped, tag = 'output window, operand 0, single buffered']
    %7 = vsyncpa [#allocation4], 0
    %8 = vsyncpa [#allocation7], 0
    %9 = vsyncpa [#allocation5], 0
    // Predicated region
    $region2: #{tpu_custom_call.1} parent=1 // pred_check
      _
    $region3: #{tpu_custom_call.1} parent=1 // pred_check_branch
      %11 = sbr.rel (0) target = $region5
    $region4: #{tpu_custom_call.1} parent=1 // pred_region
      %s13 = ssub.s32 128, 128
      %14 = vsyncadd [#allocation4], %s13
      %s16 = sshll.u32 [#allocation3], 4
      %s17 = int_to_ptr.vmem [resolvable:$true] %s16
      %19 = dma.hbm_to_vmem [thread:$0]  %s0, 128, %s17, [#allocation4]
    $region5: #{tpu_custom_call.1} parent=1 // pred_fallthru
      _
    // Predicated region
    $region6: #{tpu_custom_call.1} parent=1 // pred_check
      _
    $region7: #{tpu_custom_call.1} parent=1 // pred_check_branch
      %21 = sbr.rel (0) target = $region9
    $region8: #{tpu_custom_call.1} parent=1 // pred_region
      %s23 = ssub.s32 2048, 2048
      %24 = vsyncadd [#allocation7], %s23
      %s25 = sshll.u32 [#allocation6], 4
      %s26 = int_to_ptr.vmem [resolvable:$true] %s25
      %31 = dma.hbm_to_vmem [thread:$0]  %s1, 2048, %s26, [#allocation7], 128, 128, 8
    $region9: #{tpu_custom_call.1} parent=1 // pred_fallthru
      _
    // Predicated region
    $region10: #{tpu_custom_call.1} parent=1 // pred_check
      _
    $region11: #{tpu_custom_call.1} parent=1 // pred_check_branch
      %33 = sbr.rel (0) target = $region13
    $region12: #{tpu_custom_call.1} parent=1 // pred_region
      %34 = dma.done [#allocation4], 128
    $region13: #{tpu_custom_call.1} parent=1 // pred_fallthru
      _
    // Predicated region
    $region14: #{tpu_custom_call.1} parent=1 // pred_check
      _
    $region15: #{tpu_custom_call.1} parent=1 // pred_check_branch
      %36 = sbr.rel (0) target = $region17
    $region16: #{tpu_custom_call.1} parent=1 // pred_region
      %37 = dma.done [#allocation7], 2048
    $region17: #{tpu_custom_call.1} parent=1 // pred_fallthru
      _
    %p38 = scmp.eq.s32.totalorder 0, 0
    // Predicated region
    $region18: #{tpu_custom_call.1} parent=1 // pred_check
      %p39 = pneg %p38
    $region19: #{tpu_custom_call.1} parent=1 // pred_check_branch
      %41 = sbr.rel (%p39) target = $region21
    $region20: #{tpu_custom_call.1} parent=1 // pred_region
      %42 = vst [vmem:[#allocation2] sm:$0xff] 0.0
    $region21: #{tpu_custom_call.1} parent=1 // pred_fallthru
      _
    %v43 = vld [vmem:[#allocation2] sm:$0xff]
    %v44 = vld [vmem:[#allocation3] sm:$0xff]
    %v45 = vld [vmem:[#allocation6] sm:$0xff]
    %v46 = vld [vmem:[#allocation6 + $0x8] sm:$0xff]
    %v47 = vld [vmem:[#allocation6 + $0x10] sm:$0xff]
    %v48 = vld [vmem:[#allocation6 + $0x18] sm:$0xff]
    %v49 = vld [vmem:[#allocation6 + $0x20] sm:$0xff]
    %v50 = vld [vmem:[#allocation6 + $0x28] sm:$0xff]
    %v51 = vld [vmem:[#allocation6 + $0x30] sm:$0xff]
    %v52 = vld [vmem:[#allocation6 + $0x38] sm:$0xff]
    %v53 = vld [vmem:[#allocation6 + $0x40] sm:$0xff]
    %v54 = vld [vmem:[#allocation6 + $0x48] sm:$0xff]
    %v55 = vld [vmem:[#allocation6 + $0x50] sm:$0xff]
    %v56 = vld [vmem:[#allocation6 + $0x58] sm:$0xff]
    %v57 = vld [vmem:[#allocation6 + $0x60] sm:$0xff]
    %v58 = vld [vmem:[#allocation6 + $0x68] sm:$0xff]
    %v59 = vld [vmem:[#allocation6 + $0x70] sm:$0xff]
    %v60 = vld [vmem:[#allocation6 + $0x78] sm:$0xff]
    %61 = vmatprep.subr.mxu0 0.0
    %62 = vmatpush1.msra.mxu0 %v60
    %63 = vmatprep.subr.mxu0 0.0
    %64 = vmatpush1.msra.mxu0 %v59
    %65 = vmatprep.subr.mxu0 0.0
    %66 = vmatpush1.msra.mxu0 %v58
    %67 = vmatprep.subr.mxu0 0.0
    %68 = vmatpush1.msra.mxu0 %v57
    %69 = vmatprep.subr.mxu0 0.0
    %70 = vmatpush1.msra.mxu0 %v56
    %71 = vmatprep.subr.mxu0 0.0
    %72 = vmatpush1.msra.mxu0 %v55
    %73 = vmatprep.subr.mxu0 0.0
    %74 = vmatpush1.msra.mxu0 %v54
    %75 = vmatprep.subr.mxu0 0.0
    %76 = vmatpush1.msra.mxu0 %v53
    %77 = vmatprep.subr.mxu0 0.0
    %78 = vmatpush1.msra.mxu0 %v52
    %79 = vmatprep.subr.mxu0 0.0
    %80 = vmatpush1.msra.mxu0 %v51
    %81 = vmatprep.subr.mxu0 0.0
    %82 = vmatpush1.msra.mxu0 %v50
    %83 = vmatprep.subr.mxu0 0.0
    %84 = vmatpush1.msra.mxu0 %v49
    %85 = vmatprep.subr.mxu0 0.0
    %86 = vmatpush1.msra.mxu0 %v48
    %87 = vmatprep.subr.mxu0 0.0
    %88 = vmatpush1.msra.mxu0 %v47
    %89 = vmatprep.subr.mxu0 0.0
    %90 = vmatpush1.msra.mxu0 %v46
    %91 = vmatprep.subr.mxu0 0.0
    %92 = vmatpush1.msra.mxu0 %v45
    %93 = vmatprep.subr.mxu0 0.0
    %94 = vmatpush2.msra.mxu0 0.0
    %95 = vmatprep.subr.mxu0 0.0
    %96 = vmatpush2.msra.mxu0 0.0
    %97 = vmatprep.subr.mxu0 0.0
    %98 = vmatpush2.msra.mxu0 0.0
    %99 = vmatprep.subr.mxu0 0.0
    %100 = vmatpush2.msra.mxu0 0.0
    %101 = vmatprep.subr.mxu0 0.0
    %102 = vmatpush2.msra.mxu0 0.0
    %103 = vmatprep.subr.mxu0 0.0
    %104 = vmatpush2.msra.mxu0 0.0
    %105 = vmatprep.subr.mxu0 0.0
    %106 = vmatpush2.msra.mxu0 0.0
    %107 = vmatprep.subr.mxu0 0.0
    %108 = vmatpush2.msra.mxu0 0.0
    %109 = vmatprep.subr.mxu0 0.0
    %110 = vmatpush2.msra.mxu0 0.0
    %111 = vmatprep.subr.mxu0 0.0
    %112 = vmatpush2.msra.mxu0 0.0
    %113 = vmatprep.subr.mxu0 0.0
    %114 = vmatpush2.msra.mxu0 0.0
    %115 = vmatprep.subr.mxu0 0.0
    %116 = vmatpush2.msra.mxu0 0.0
    %117 = vmatprep.subr.mxu0 0.0
    %118 = vmatpush2.msra.mxu0 0.0
    %119 = vmatprep.subr.mxu0 0.0
    %120 = vmatpush2.msra.mxu0 0.0
    %121 = vmatprep.subr.mxu0 0.0
    %122 = vmatpush2.msra.mxu0 0.0
    %123 = vmatprep.subr.mxu0 0.0
    %124 = vmatpush2.msra.mxu0 0.0
    %125 = vmatprep.mubr.f32.mxu0 0.0
    %126 = vmatmul.mubr.f32.gmra.mxu0 %v44
    %v127 = vpop.f32.mrf.mxu0
    %v128 = vadd.f32 0.0, %v127
    %v129 = vpop.f32.mrf.mxu0
    %130 = vdwg.mxu0
    %v131 = vadd.f32 %v43, %v128
    %132 = vst [vmem:[#allocation2] sm:$0xff] %v131
    // Predicated region
    $region22: #{tpu_custom_call.1} parent=1 // pred_check
      %p133 = pneg %p38
    $region23: #{tpu_custom_call.1} parent=1 // pred_check_branch
      %135 = sbr.rel (%p133) target = $region25
    $region24: #{tpu_custom_call.1} parent=1 // pred_region
      %v136 = vld [vmem:[#allocation2] sm:$0xff]
      %v137 = vrot.slane %v136, 4
      %v138 = vadd.f32 %v136, %v137
      %v139 = vrot.slane %v138, 2
      %v140 = vadd.f32 %v138, %v139
      %v141 = vrot.slane %v140, 1
      %v142 = vadd.f32 %v140, %v141
      %v143 = vmul.f32 %v142, 0.125
      %v144 = vsub.f32 %v136, %v143
      %v145 = vmul.f32 %v144, %v144
      %v146 = vrot.slane %v145, 4
      %v147 = vadd.f32 %v145, %v146
      %v148 = vrot.slane %v147, 2
      %v149 = vadd.f32 %v147, %v148
      %v150 = vrot.slane %v149, 1
      %v151 = vadd.f32 %v149, %v150
      %v152 = vmul.f32 %v151, 0.125
      %v153 = vadd.f32 %v152, 0.0001
      %v154 = vrsqrt.pop %v153
      %v155 = vmul.f32 %v144, %v154
      %v156 = vmul.f32 %v155, 0.01
      %v157 = vmax.f32 %v155, %v156
      %158 = vst [vmem:[#allocation8] sm:$0xff] %v157
    $region25: #{tpu_custom_call.1} parent=1 // pred_fallthru
      _
    // Predicated region
    $region26: #{tpu_custom_call.1} parent=1 // pred_check
      _
    $region27: #{tpu_custom_call.1} parent=1 // pred_check_branch
      %160 = sbr.rel (0) target = $region29
    $region28: #{tpu_custom_call.1} parent=1 // pred_region
      %s162 = ssub.s32 128, 128
      %163 = vsyncadd [#allocation5], %s162
      %s165 = sshll.u32 [#allocation8], 4
      %s166 = int_to_ptr.vmem [resolvable:$true] %s165
      %168 = dma.vmem_to_hbm [thread:$0]  %s166, 128, %s2, [#allocation5]
    $region29: #{tpu_custom_call.1} parent=1 // pred_fallthru
      _
    // Predicated region
    $region30: #{tpu_custom_call.1} parent=1 // pred_check
      _
    $region31: #{tpu_custom_call.1} parent=1 // pred_check_branch
      %170 = sbr.rel (0) target = $region33
    $region32: #{tpu_custom_call.1} parent=1 // pred_region
      %171 = dma.done [#allocation5], 128
    $region33: #{tpu_custom_call.1} parent=1 // pred_fallthru
      _
    %172 = vsyncpa [#allocation4], 1
    %173 = vsyncpa [#allocation7], 1
    %174 = vsyncpa [#allocation5], 1

</llo_original>
